<compile_context>
chip_gen: v5e
topology: v5e:2x2
jax: 0.10.0
libtpu: 0.0.40
codegen_flags: <defaults>
</compile_context>

<pallas_src>
from functools import partial

import jax
import jax.numpy as jnp
from jax.experimental import pallas as pl
from jax.experimental.pallas import tpu as pltpu


def _round_up(x, m):
    return ((x + m - 1) // m) * m


def _pick_tile(total, target, aligns):
    """Largest tile <= target dividing `total` that is a multiple of one of
    `aligns` (tried in order, e.g. 256 first for v6e/v7x MXUs, then 128);
    falls back to the full extent (allowed by the block rule)."""
    if total <= target:
        return total
    for align in aligns:
        t = (target // align) * align
        while t >= align:
            if total % t == 0:
                return t
            t -= align
    return total


def _device_kind():
    try:
        return jax.devices()[0].device_kind.lower()
    except Exception:
        return ""


def _vmem_cap_bytes(kind):
    # v7x: 64 MiB VMEM per TensorCore -> cap at 48 MiB to leave Mosaic headroom.
    # v5e / v6e: 128 MiB physical -> allow well past the 64 MiB scoped default.
    if "v7" in kind:
        return 48 * 1024 * 1024
    return 100 * 1024 * 1024


def qkv_lora_kernel(x_ref, wt_ref, b_ref, p_ref, bqv_ref, o_ref, acc_ref, *,
                    dim, tn, skip_k_third, n_axis, k_axis):
    """One grid step = one (m-tile, n-tile, k-tile) [optionally per adapter].

    x_ref  : (tm, tk)       activation tile
    wt_ref : (tk, tn)       shared qkv weight tile (W^T)
    b_ref  : (1, tn)        shared qkv bias tile (f32)
    p_ref  : (tm, pw)       precomputed LoRA down-projection rows (x @ [A_q|A_v])
    bqv_ref: (1, pw, tn)    alpha-scaled block-diagonal [B_q ; B_v] tile
    o_ref  : (tm, tn)       output tile
    acc_ref: (tm, tn) f32   accumulator scratch (bias-initialized at k == 0)
    """
    n = pl.program_id(n_axis)
    k = pl.program_id(k_axis)
    nk = pl.num_programs(k_axis)

    # Bias-initialized accumulator: saves a (tm, tn) VPU add in the epilogue.
    @pl.when(k == 0)
    def _():
        acc_ref[...] = jnp.broadcast_to(b_ref[...], acc_ref.shape)

    acc_ref[...] += jnp.dot(x_ref[...], wt_ref[...],
                            preferred_element_type=jnp.float32)

    # Finalize once per output tile: LoRA up-projection + cast + store.
    @pl.when(k == nk - 1)
    def _():
        y = acc_ref[...]
        if skip_k_third:
            # dim % tn == 0: each N tile lies entirely inside one of the
            # q / k / v thirds; the k third never touches the LoRA path.
            n_start = n * tn
            in_k_third = jnp.logical_and(n_start >= dim, n_start < 2 * dim)

            @pl.when(jnp.logical_not(in_k_third))
            def _():
                d = jnp.dot(p_ref[...], bqv_ref[0],
                            preferred_element_type=jnp.float32)
                o_ref[...] = (y + d).astype(o_ref.dtype)

            @pl.when(in_k_third)
            def _():
                o_ref[...] = y.astype(o_ref.dtype)
        else:
            # Fallback: the block-diagonal B makes the add a no-op on the
            # k third (its rows are zero there).
            d = jnp.dot(p_ref[...], bqv_ref[0],
                        preferred_element_type=jnp.float32)
            o_ref[...] = (y + d).astype(o_ref.dtype)


def grid_search_qkv_lora(src, w, b, A_q, B_q, A_v, B_v, alpha, *,
                         tm=None, tn=None, tk=None, compute_dtype=None,
                         fuse_adapters=None):
    """src: (nb_adapters*bs, seq, dim); w: (3*dim, dim); b: (3*dim,).

    A_q/A_v: (nb_adapters, dim, rank); B_q/B_v: (nb_adapters, rank, dim).
    Returns (nb_adapters*bs, seq, 3*dim) in src.dtype.

    compute_dtype: MXU operand dtype (default bf16 — accumulation is always
    f32 in VMEM scratch; pass jnp.float32 for bit-tighter results).
    fuse_adapters: None=auto.  Fused path encodes the adapter in a zero-padded
    p of width nb*2r so m-tiles can span adapters and W^T is streamed only
    once per m-tile (best when rows-per-adapter is small and nb*2r is small).
    """
    nb_adapters, dim, rank = A_q.shape
    total_b, seq, src_dim = src.shape
    assert src_dim == dim
    assert total_b % nb_adapters == 0
    bs = total_b // nb_adapters

    M = bs * seq                       # rows per adapter
    N = 3 * dim
    K = dim
    r2 = 2 * rank
    out_dtype = src.dtype

    # bf16 MXU operands by default (≈3x MXU throughput vs multi-pass f32).
    cd = jnp.dtype(compute_dtype) if compute_dtype is not None else jnp.dtype(jnp.bfloat16)
    tm_align = 16 if cd.itemsize < 4 else 8       # bf16 packs 16 rows / vreg
    kind = _device_kind()

    # ---- wrapper-side prep (no in-kernel reshapes / concats) ---------------
    x3 = src.reshape(nb_adapters, M, dim)
    wt = jnp.transpose(w).astype(cd)                          # (dim, 3*dim)
    b2 = b.reshape(1, N).astype(jnp.float32)                  # (1, 3*dim)

    # LoRA down-projection p = x @ [A_q | A_v]  (tiny XLA matmul, f32).
    a_qv = jnp.concatenate([A_q, A_v], axis=-1)               # (nb, dim, 2r)
    p3 = jnp.einsum("amd,adr->amr", x3, a_qv,
                    precision=jax.lax.Precision.HIGHEST)      # (nb, M, 2r)

    # alpha-scaled block-diagonal up-projection:  [alpha*B_q 0 0; 0 0 alpha*B_v]
    alpha_f = jnp.float32(alpha)
    zeros = jnp.zeros((nb_adapters, rank, dim), jnp.float32)
    b_top = jnp.concatenate([alpha_f * B_q.astype(jnp.float32), zeros, zeros], axis=-1)
    b_bot = jnp.concatenate([zeros, zeros, alpha_f * B_v.astype(jnp.float32)], axis=-1)
    b_qv = jnp.concatenate([b_top, b_bot], axis=1)            # (nb, 2r, 3*dim)

    # ---- path selection -----------------------------------------------------
    if fuse_adapters is None:
        # Padded up-projection adds ~nb*2r/dim extra FLOPs; only fuse while small.
        fuse_adapters = nb_adapters * r2 <= max(128, dim // 8)
    if not fuse_adapters and M % tm_align != 0:
        fuse_adapters = True   # per-adapter tiling needs aligned per-adapter rows

    # ---- N / K tiles (256-aligned preferred for v6e/v7x 256x256 MXUs) -------
    tn_default = 1536 if "v6" in kind else 1024
    tn = _pick_tile(N, tn if tn is not None else tn_default, (256, 128))
    tk = _pick_tile(K, tk if tk is not None else 512, (256, 128))
    n_tiles = N // tn
    k_tiles = K // tk
    skip_k_third = (dim % tn == 0)

    # ---- M tile + row padding (keeps (8,128) block rules for any M) ---------
    tm_req = tm if tm is not None else 512
    tm_target = max(tm_align, (tm_req // tm_align) * tm_align)

    if fuse_adapters:
        rows = nb_adapters * M
        tm = min(tm_target, _round_up(rows, tm_align))
        rows_pad = _round_up(rows, tm)
        pw = nb_adapters * r2

        x2 = x3.reshape(rows, dim)
        # scatter each adapter's p into its own 2r columns (zero elsewhere)
        eye = jnp.eye(nb_adapters, dtype=p3.dtype)
        p2 = jnp.einsum("amr,ab->ambr", p3, eye).reshape(rows, pw)
        if rows_pad != rows:
            pad = rows_pad - rows
            x2 = jnp.pad(x2, ((0, pad), (0, 0)))
            p2 = jnp.pad(p2, ((0, pad), (0, 0)))
        x2 = x2.astype(cd)
        p2 = p2.astype(cd)
        bqv_in = b_qv.reshape(1, pw, N).astype(cd)

        m_tiles = rows_pad // tm
        grid = (m_tiles, n_tiles, k_tiles)
        in_specs = [
            pl.BlockSpec((tm, tk), lambda m, n, k: (m, k)),
            # W^T streamed over (k, n).  If a v5e profile shows exposed weight
            # DMA waits, add pipeline_mode=pl.Buffered(3) here.
            pl.BlockSpec((tk, tn), lambda m, n, k: (k, n)),
            pl.BlockSpec((1, tn), lambda m, n, k: (0, n)),
            pl.BlockSpec((tm, pw), lambda m, n, k: (m, 0)),
            pl.BlockSpec((1, pw, tn), lambda m, n, k: (0, 0, n)),
        ]
        out_specs = pl.BlockSpec((tm, tn), lambda m, n, k: (m, n))
        dims = ("parallel", "parallel", "arbitrary")
        n_axis, k_axis = 1, 2
    else:
        tm = min(tm_target, _round_up(M, tm_align))
        M_pad = _round_up(M, tm)
        pw = r2
        rows_pad = nb_adapters * M_pad

        if M_pad != M:
            pad = M_pad - M
            x3p = jnp.pad(x3, ((0, 0), (0, pad), (0, 0)))
            p3p = jnp.pad(p3, ((0, 0), (0, pad), (0, 0)))
        else:
            x3p, p3p = x3, p3
        x2 = x3p.reshape(rows_pad, dim).astype(cd)
        p2 = p3p.reshape(rows_pad, pw).astype(cd)
        bqv_in = b_qv.astype(cd)                              # (nb, 2r, 3*dim)

        m_tiles = M_pad // tm
        grid = (nb_adapters, m_tiles, n_tiles, k_tiles)
        in_specs = [
            pl.BlockSpec((tm, tk), lambda a, m, n, k: (a * m_tiles + m, k)),
            pl.BlockSpec((tk, tn), lambda a, m, n, k: (k, n)),
            pl.BlockSpec((1, tn), lambda a, m, n, k: (0, n)),
            pl.BlockSpec((tm, pw), lambda a, m, n, k: (a * m_tiles + m, 0)),
            pl.BlockSpec((1, pw, tn), lambda a, m, n, k: (a, 0, n)),
        ]
        out_specs = pl.BlockSpec((tm, tn), lambda a, m, n, k: (a * m_tiles + m, n))
        dims = ("parallel", "parallel", "parallel", "arbitrary")
        n_axis, k_axis = 2, 3

    kernel = partial(qkv_lora_kernel, dim=dim, tn=tn,
                     skip_k_third=skip_k_third, n_axis=n_axis, k_axis=k_axis)

    # Advisory cost estimate for XLA scheduling (kernel-side work only; the
    # down-projection now lives in the wrapper).
    itemsize_in = cd.itemsize
    itemsize_out = jnp.dtype(out_dtype).itemsize
    flops = 2 * rows_pad * K * N + 2 * rows_pad * pw * N
    bytes_accessed = (x2.size * itemsize_in + wt.size * itemsize_in
                      + p2.size * itemsize_in + bqv_in.size * itemsize_in
                      + b2.size * 4 + rows_pad * N * itemsize_out)
    cost = pl.CostEstimate(flops=int(flops), transcendentals=0,
                           bytes_accessed=int(bytes_accessed))

    # Explicit VMEM budget (double-buffered inputs/output + f32 accumulator),
    # capped per chip generation.
    vmem_est = (2 * (tm * tk + tk * tn + tm * pw + pw * tn) * itemsize_in
                + 2 * tn * 4
                + 2 * tm * tn * itemsize_out
                + tm * tn * 4)
    vmem_limit = int(min(_vmem_cap_bytes(kind),
                         max(2 * vmem_est, 32 * 1024 * 1024)))

    out = pl.pallas_call(
        kernel,
        out_shape=jax.ShapeDtypeStruct((rows_pad, N), out_dtype),
        grid=grid,
        in_specs=in_specs,
        out_specs=out_specs,
        scratch_shapes=[pltpu.VMEM((tm, tn), jnp.float32)],
        compiler_params=pltpu.CompilerParams(
            dimension_semantics=dims,
            vmem_limit_bytes=vmem_limit),
        cost_estimate=cost,
    )(x2, wt, b2, p2, bqv_in)

    if fuse_adapters:
        out = out[:nb_adapters * M]
    else:
        out = out.reshape(nb_adapters, M_pad, N)[:, :M, :]
    return out.reshape(total_b, seq, N)


def reference(src, w, b, A_q, B_q, A_v, B_v, alpha):
    nb_adapters, dim, _ = A_q.shape
    bs = src.shape[0] // nb_adapters
    hp = jax.lax.Precision.HIGHEST
    outs = []
    for i in range(nb_adapters):
        x = src[i * bs:(i + 1) * bs]
        y = jnp.einsum("bsd,od->bso", x, w, precision=hp) + b
        lq = jnp.einsum("bsr,rd->bsd",
                        jnp.einsum("bsd,dr->bsr", x, A_q[i], precision=hp),
                        B_q[i], precision=hp)
        lv = jnp.einsum("bsr,rd->bsd",
                        jnp.einsum("bsd,dr->bsr", x, A_v[i], precision=hp),
                        B_v[i], precision=hp)
        y = y.at[:, :, :dim].add(alpha * lq)
        y = y.at[:, :, 2 * dim:].add(alpha * lv)
        outs.append(y)
    return jnp.concatenate(outs, axis=0)


if __name__ == "__main__":
    nb_adapters = 2
    bs = 2
    seq = 8
    dim = 256
    rank = 4
    alpha = 8.0

    key = jax.random.PRNGKey(0)
    k_src, k_w, k_b, k_aq, k_bq, k_av, k_bv = jax.random.split(key, 7)

    src = jax.random.normal(k_src, (nb_adapters * bs, seq, dim), jnp.float32)

    # shared qkv Linear(dim -> 3*dim): weight (out, in), bias (3*dim,)
    w = jax.random.normal(k_w, (3 * dim, dim), jnp.float32) * 0.05
    b = jax.random.normal(k_b, (3 * dim,), jnp.float32) * 0.05

    # Per-adapter LoRA params (B is zeros in the module's __init__; use small
    # randoms so the LoRA path is numerically exercised).
    std = jnp.sqrt(jnp.float32(rank))
    A_q = jax.random.normal(k_aq, (nb_adapters, dim, rank), jnp.float32) / std
    B_q = jax.random.normal(k_bq, (nb_adapters, rank, dim), jnp.float32) * 0.02
    A_v = jax.random.normal(k_av, (nb_adapters, dim, rank), jnp.float32) / std
    B_v = jax.random.normal(k_bv, (nb_adapters, rank, dim), jnp.float32) * 0.02

    ref = reference(src, w, b, A_q, B_q, A_v, B_v, alpha)

    # (a) per-adapter grid, f32 compute, explicit tiles: exercises K
    #     accumulation, multi-N tiling and the skip-LoRA-on-K-third path.
    out_a = grid_search_qkv_lora(src, w, b, A_q, B_q, A_v, B_v, alpha,
                                 tm=16, tn=256, tk=128,
                                 compute_dtype=jnp.float32,
                                 fuse_adapters=False)
    out_a = jax.block_until_ready(out_a)
    assert out_a.shape == (nb_adapters * bs, seq, 3 * dim)
    assert jnp.allclose(out_a, ref, atol=1e-3, rtol=1e-3), "per-adapter f32 mismatch"

    # (b) fused-adapter grid, f32 compute, explicit tiles (multi-m, multi-k,
    #     adapter-spanning m-tiles).
    out_b = grid_search_qkv_lora(src, w, b, A_q, B_q, A_v, B_v, alpha,
                                 tm=32, tn=256, tk=128,
                                 compute_dtype=jnp.float32,
                                 fuse_adapters=True)
    out_b = jax.block_until_ready(out_b)
    assert jnp.allclose(out_b, ref, atol=1e-3, rtol=1e-3), "fused f32 mismatch"

    # (c) defaults: fused grid, bf16 MXU operands with f32 accumulation
    #     (looser tolerance for bf16 operand rounding).
    out_c = grid_search_qkv_lora(src, w, b, A_q, B_q, A_v, B_v, alpha)
    out_c = jax.block_until_ready(out_c)
    assert out_c.shape == (nb_adapters * bs, seq, 3 * dim)
    assert jnp.allclose(out_c, ref, atol=1.5e-1, rtol=5e-2), "bf16 default mismatch"

    print("KERNEL_OK")
</pallas_src>

<mosaic_0001>
module attributes {stable_mosaic.version = 11 : i64} {
  func.func @qkv_lora_kernel(%arg0: i32, %arg1: i32, %arg2: i32, %arg3: i32, %arg4: memref<16x128xf32, #tpu.memory_space<vmem>>, %arg5: memref<128x256xf32, #tpu.memory_space<vmem>>, %arg6: memref<1x256xf32, #tpu.memory_space<vmem>>, %arg7: memref<16x8xf32, #tpu.memory_space<vmem>>, %arg8: memref<1x8x256xf32, #tpu.memory_space<vmem>>, %arg9: memref<16x256xf32, #tpu.memory_space<vmem>>, %arg10: memref<16x256xf32, #tpu.memory_space<vmem>>) attributes {dimension_semantics = [#tpu.dimension_semantics<parallel>, #tpu.dimension_semantics<parallel>, #tpu.dimension_semantics<parallel>, #tpu.dimension_semantics<arbitrary>], iteration_bounds = array<i64: 2, 1, 3, 2>, scalar_prefetch = 0 : i64, scratch_operands = 1 : i64, tpu.core_type = #tpu.core_type<tc>, window_params = [{transform_indices = @transform_0, window_bounds = array<i64: 16, 128>}, {transform_indices = @transform_1, window_bounds = array<i64: 128, 256>}, {transform_indices = @transform_2, window_bounds = array<i64: 1, 256>}, {transform_indices = @transform_3, window_bounds = array<i64: 16, 8>}, {transform_indices = @transform_4, window_bounds = array<i64: 1, 8, 256>}, {transform_indices = @transform_5, window_bounds = array<i64: 16, 256>}]} {
    %c0_i32 = arith.constant 0 : i32
    %0 = arith.cmpi eq, %arg3, %c0_i32 : i32
    %1 = arith.extui %0 : i1 to i32
    %c0_i32_0 = arith.constant 0 : i32
    %2 = arith.cmpi ne, %1, %c0_i32_0 : i32
    scf.if %2 {
      %c0_9 = arith.constant 0 : index
      %c0_10 = arith.constant 0 : index
      %12 = vector.load %arg6[%c0_9, %c0_10] : memref<1x256xf32, #tpu.memory_space<vmem>>, vector<1x256xf32>
      %13 = vector.shape_cast %12 : vector<1x256xf32> to vector<1x256xf32>
      %14 = vector.broadcast %13 : vector<1x256xf32> to vector<16x256xf32>
      %c0_11 = arith.constant 0 : index
      %c0_12 = arith.constant 0 : index
      %15 = vector.load %arg10[%c0_11, %c0_12] : memref<16x256xf32, #tpu.memory_space<vmem>>, vector<16x256xf32>
      tpu.vector_store %arg10[%c0_11, %c0_12], %14 {strides = array<i32>} : memref<16x256xf32, #tpu.memory_space<vmem>>, vector<16x256xf32>,
    } else {
    }
    %c0 = arith.constant 0 : index
    %c0_1 = arith.constant 0 : index
    %3 = vector.load %arg10[%c0, %c0_1] : memref<16x256xf32, #tpu.memory_space<vmem>>, vector<16x256xf32>
    %c0_2 = arith.constant 0 : index
    %c0_3 = arith.constant 0 : index
    %4 = vector.load %arg4[%c0_2, %c0_3] : memref<16x128xf32, #tpu.memory_space<vmem>>, vector<16x128xf32>
    %c0_4 = arith.constant 0 : index
    %c0_5 = arith.constant 0 : index
    %5 = vector.load %arg5[%c0_4, %c0_5] : memref<128x256xf32, #tpu.memory_space<vmem>>, vector<128x256xf32>
    %cst = arith.constant dense<0.000000e+00> : vector<16x256xf32>
    %6 = tpu.matmul %4, %5, %cst {dimension_numbers = #tpu.dot_dimension_numbers<[1], [0], [0], [1], [0, 0, 1, 1], [], []>} : vector<16x128xf32>, vector<128x256xf32>, vector<16x256xf32> -> vector<16x256xf32>
    %7 = arith.addf %3, %6 : vector<16x256xf32>
    %c0_6 = arith.constant 0 : index
    %c0_7 = arith.constant 0 : index
    %8 = vector.load %arg10[%c0_6, %c0_7] : memref<16x256xf32, #tpu.memory_space<vmem>>, vector<16x256xf32>
    tpu.vector_store %arg10[%c0_6, %c0_7], %7 {strides = array<i32>} : memref<16x256xf32, #tpu.memory_space<vmem>>, vector<16x256xf32>,
    %c1_i32 = arith.constant 1 : i32
    %9 = arith.cmpi eq, %arg3, %c1_i32 : i32
    %10 = arith.extui %9 : i1 to i32
    %c0_i32_8 = arith.constant 0 : i32
    %11 = arith.cmpi ne, %10, %c0_i32_8 : i32
    scf.if %11 {
      %c0_9 = arith.constant 0 : index
      %c0_10 = arith.constant 0 : index
      %12 = vector.load %arg10[%c0_9, %c0_10] : memref<16x256xf32, #tpu.memory_space<vmem>>, vector<16x256xf32>
      %c256_i32 = arith.constant 256 : i32
      %13 = arith.muli %arg2, %c256_i32 : i32
      %c256_i32_11 = arith.constant 256 : i32
      %14 = arith.cmpi sge, %13, %c256_i32_11 : i32
      %c512_i32 = arith.constant 512 : i32
      %15 = arith.cmpi slt, %13, %c512_i32 : i32
      %16 = arith.andi %14, %15 : i1
      %true = arith.constant true
      %17 = arith.xori %16, %true : i1
      %18 = arith.extui %17 : i1 to i32
      %c0_i32_12 = arith.constant 0 : i32
      %19 = arith.cmpi ne, %18, %c0_i32_12 : i32
      scf.if %19 {
        %c0_14 = arith.constant 0 : index
        %c0_15 = arith.constant 0 : index
        %22 = vector.load %arg7[%c0_14, %c0_15] : memref<16x8xf32, #tpu.memory_space<vmem>>, vector<16x8xf32>
        %c0_16 = arith.constant 0 : index
        %c0_17 = arith.constant 0 : index
        %c0_18 = arith.constant 0 : index
        %23 = vector.load %arg8[%c0_16, %c0_17, %c0_18] : memref<1x8x256xf32, #tpu.memory_space<vmem>>, vector<1x8x256xf32>
        %24 = vector.shape_cast %23 : vector<1x8x256xf32> to vector<8x256xf32>
        %cst_19 = arith.constant dense<0.000000e+00> : vector<16x256xf32>
        %25 = tpu.matmul %22, %24, %cst_19 {dimension_numbers = #tpu.dot_dimension_numbers<[1], [0], [0], [1], [0, 0, 1, 1], [], []>} : vector<16x8xf32>, vector<8x256xf32>, vector<16x256xf32> -> vector<16x256xf32>
        %26 = arith.addf %12, %25 : vector<16x256xf32>
        %c0_20 = arith.constant 0 : index
        %c0_21 = arith.constant 0 : index
        %27 = vector.load %arg9[%c0_20, %c0_21] : memref<16x256xf32, #tpu.memory_space<vmem>>, vector<16x256xf32>
        tpu.vector_store %arg9[%c0_20, %c0_21], %26 {strides = array<i32>} : memref<16x256xf32, #tpu.memory_space<vmem>>, vector<16x256xf32>,
      } else {
      }
      %20 = arith.extui %16 : i1 to i32
      %c0_i32_13 = arith.constant 0 : i32
      %21 = arith.cmpi ne, %20, %c0_i32_13 : i32
      scf.if %21 {
        %c0_14 = arith.constant 0 : index
        %c0_15 = arith.constant 0 : index
        %22 = vector.load %arg9[%c0_14, %c0_15] : memref<16x256xf32, #tpu.memory_space<vmem>>, vector<16x256xf32>
        tpu.vector_store %arg9[%c0_14, %c0_15], %12 {strides = array<i32>} : memref<16x256xf32, #tpu.memory_space<vmem>>, vector<16x256xf32>,
      } else {
      }
    } else {
    }
    return
  }
  func.func @transform_0(%arg0: i32, %arg1: i32, %arg2: i32, %arg3: i32) -> (i32, i32) {
    %c1_i32 = arith.constant 1 : i32
    %0 = arith.muli %arg0, %c1_i32 : i32
    %1 = arith.addi %0, %arg1 : i32
    %c0_i32 = arith.constant 0 : i32
    return %1, %arg3 : i32, i32
  }
  func.func @transform_1(%arg0: i32, %arg1: i32, %arg2: i32, %arg3: i32) -> (i32, i32) {
    %c0_i32 = arith.constant 0 : i32
    return %arg3, %arg2 : i32, i32
  }
  func.func @transform_2(%arg0: i32, %arg1: i32, %arg2: i32, %arg3: i32) -> (i32, i32) {
    %c0_i32 = arith.constant 0 : i32
    %c0_i32_0 = arith.constant 0 : i32
    return %c0_i32, %arg2 : i32, i32
  }
  func.func @transform_3(%arg0: i32, %arg1: i32, %arg2: i32, %arg3: i32) -> (i32, i32) {
    %c1_i32 = arith.constant 1 : i32
    %0 = arith.muli %arg0, %c1_i32 : i32
    %1 = arith.addi %0, %arg1 : i32
    %c0_i32 = arith.constant 0 : i32
    %c0_i32_0 = arith.constant 0 : i32
    return %1, %c0_i32 : i32, i32
  }
  func.func @transform_4(%arg0: i32, %arg1: i32, %arg2: i32, %arg3: i32) -> (i32, i32, i32) {
    %c0_i32 = arith.constant 0 : i32
    %c0_i32_0 = arith.constant 0 : i32
    return %arg0, %c0_i32, %arg2 : i32, i32, i32
  }
  func.func @transform_5(%arg0: i32, %arg1: i32, %arg2: i32, %arg3: i32) -> (i32, i32) {
    %c1_i32 = arith.constant 1 : i32
    %0 = arith.muli %arg0, %c1_i32 : i32
    %1 = arith.addi %0, %arg1 : i32
    %c0_i32 = arith.constant 0 : i32
    return %1, %arg2 : i32, i32
  }
}

</mosaic_0001>

<llo_original>
// kernel: tpu_custom_call.1
$region0: #{tpu_custom_call.1}
  #allocation0 [shape = 'u32[]', space=smem, size = 0x4, offset = 0x4, fixed_abs, tag = 'smem constant byte address 0x4 - core index']
  #allocation1 [shape = 'u32[72,128]{1,0:T(1,128)}', space=vmem, size = 0x9000, scoped, tag = 'internal scratch']
  #allocation2 [shape = 'f32[16,256]{1,0:T(8,128)}', space=vmem, size = 0x4000, scoped, tag = 'scratch operand']
  %s0 = inlined_call_operand.hbm [shape: f32[32,256], index: 0, kind: input, shape index: {}]
  %s1 = inlined_call_operand.hbm [shape: f32[256,768], index: 1, kind: input, shape index: {}]
  %s2 = inlined_call_operand.vmem [shape: f32[1,768], index: 2, kind: input, shape index: {}]
  %s3 = inlined_call_operand.vmem [shape: f32[32,8], index: 3, kind: input, shape index: {}]
  %s4 = inlined_call_operand.hbm [shape: f32[2,8,768], index: 4, kind: input, shape index: {}]
  %s5 = inlined_call_operand.hbm [shape: f32[32,768], index: 5, kind: output, shape index: {}]
  %s6 = sld [smem:[#allocation0]]
  $region81: #{tpu_custom_call.1} parent=0
    _
  %s8 = ssub.s32 1, %s6
  %s9 = scalar_select 0, %s8, %s6
  $region1: #{tpu_custom_call.1} parent=0
    #allocation3 [shape = 'u8[16384]{0}', space=vmem, size = 0x4000, scoped, tag = 'input window, operand 0']
    #allocation4 [shape = 's32[2]{0}', space=sflag, size = 0x8, scoped, tag = 'scoped memory for tpu_custom_call.1']
    #allocation5 [shape = 's32[2]{0}', space=sflag, size = 0x8, scoped, tag = 'scoped memory for tpu_custom_call.1']
    #allocation6 [shape = 'u8[262144]{0}', space=vmem, size = 0x40000, scoped, tag = 'input window, operand 1']
    #allocation7 [shape = 's32[2]{0}', space=sflag, size = 0x8, scoped, tag = 'scoped memory for tpu_custom_call.1']
    #allocation8 [shape = 'u8[16384]{0}', space=vmem, size = 0x4000, scoped, tag = 'input window, operand 4']
    #allocation9 [shape = 'u8[32768]{0}', space=vmem, size = 0x8000, scoped, tag = 'output window, operand 0']
    %10 = vsyncpa [#allocation4], 0
    %s11 = scalar_lea.sflag [#allocation4], 1
    %12 = vsyncpa %s11, 0
    %13 = vsyncpa [#allocation7], 0
    %s14 = scalar_lea.sflag [#allocation7], 1
    %15 = vsyncpa %s14, 0
    %16 = vsyncpa [#allocation5], 0
    %s17 = scalar_lea.sflag [#allocation5], 1
    %18 = vsyncpa %s17, 0
    loop: start=0, step=1, limit=14
    $region2: #{tpu_custom_call.1} parent=1 // loop_pre_header
      _
    $region3: #{tpu_custom_call.1} parent=1 // loop_header
      %s20 = sphi 0, %s24
      %p21 = scmp.ge.s32.totalorder %s20, 14
      %s27 = sphi 0, %s53
      %s28 = sphi 0, %s49
      %s29 = sphi 0, %s45
      %s30 = sphi 0, %s41
      %s31 = sphi 0, %s27
      %s32 = sphi 0, %s28
      %s33 = sphi 0, %s29
      %s34 = sphi 0, %s30
      %s35 = sphi 0, %s31
      %s36 = sphi 0, %s32
      %s37 = sphi 0, %s33
      %s38 = sphi 0, %s34
      %s60 = sphi 0, %s62
      %s63 = sphi 0, %s60
      %s64 = sphi 0, %s63
      %s80 = sphi 0, %s64
      %s88 = sphi 0, %s90
      %s91 = sphi 0, %s88
      %s92 = sphi 0, %s91
      %s108 = sphi 0, %s92
      %s114 = sphi 0, %s116
      %s117 = sphi 0, %s114
      %s118 = sphi 0, %s117
      %s134 = sphi 0, %s118
      %s142 = sphi 0, %s144
      %s145 = sphi 0, %s142
      %s146 = sphi 0, %s145
      %s162 = sphi 0, %s146
      %s170 = sphi 0, %s172
      %s173 = sphi 0, %s170
      %s174 = sphi 0, %s173
      %s190 = sphi 0, %s174
      %s200 = sphi 0, %s202
      %s203 = sphi 0, %s200
      %s204 = sphi 0, %s203
      %s220 = sphi 0, %s204
    $region4: #{tpu_custom_call.1} parent=1 // loop_header_branch
      %23 = sbr.rel (%p21) target = $region8
    $region5: #{tpu_custom_call.1} parent=1 // loop_body
      %s25 = ssub.s32 %s20, 1
      %s26 = ssub.s32 %s20, 2
      %s39 = sadd.s32 1, %s30
      %p40 = scmp.ge.s32.totalorder %s39, 2
      %s41 = scalar_select %p40, 0, %s39
      %s42 = sadd.s32 1, %s29
      %s43 = scalar_select %p40, %s42, %s29
      %p44 = scmp.ge.s32.totalorder %s43, 3
      %s45 = scalar_select %p44, 0, %s43
      %s46 = sadd.s32 1, %s28
      %s47 = scalar_select %p44, %s46, %s28
      %p48 = scmp.ge.s32.totalorder %s47, 1
      %s49 = scalar_select %p48, 0, %s47
      %s50 = sadd.s32 1, %s27
      %s51 = scalar_select %p48, %s50, %s27
      %p52 = scmp.ge.s32.totalorder %s51, 2
      %s53 = scalar_select %p52, 0, %s51
      %s54 = sadd.s32 %s27, %s28
      %s55 = sadd.s32 %s53, %s49
      %s56 = ssub.s32 %s54, %s55
      %s57 = ssub.s32 %s30, %s41
      %s58 = sor.u32 %s56, %s57
      %p59 = scmp.eq.s32.totalorder %s58, 0
      %s61 = sadd.s32 %s60, 1
      %s62 = scalar_select %p59, %s60, %s61
      %p65 = pneg %p59
      %p66 = scmp.eq.s32.totalorder %s20, 11
      %p67 = por %p65, %p66
      %p68 = scmp.ne.s32.totalorder %s60, %s63
      %p69 = scmp.eq.s32.totalorder %s20, 0
      %p70 = por %p68, %p69
      %p71 = scmp.ne.s32.totalorder %s60, %s63
      %p72 = scmp.eq.s32.totalorder %s25, 11
      %p73 = por %p71, %p72
      %p74 = scmp.ne.s32.totalorder %s63, %s64
      %p75 = scmp.eq.s32.totalorder %s25, 0
      %p76 = por %p74, %p75
      %p77 = scmp.ne.s32.totalorder %s63, %s64
      %p78 = scmp.eq.s32.totalorder %s26, 11
      %p79 = por %p77, %p78
      %p81 = scmp.ne.s32.totalorder %s64, %s80
      %p82 = scmp.eq.s32.totalorder %s26, 0
      %p83 = por %p81, %p82
      %s84 = ssub.s32 %s30, %s41
      %s85 = ssub.s32 %s29, %s45
      %s86 = sor.u32 %s84, %s85
      %p87 = scmp.eq.s32.totalorder %s86, 0
      %s89 = sadd.s32 %s88, 1
      %s90 = scalar_select %p87, %s88, %s89
      %p93 = pneg %p87
      %p94 = scmp.eq.s32.totalorder %s20, 11
      %p95 = por %p93, %p94
      %p96 = scmp.ne.s32.totalorder %s88, %s91
      %p97 = scmp.eq.s32.totalorder %s20, 0
      %p98 = por %p96, %p97
      %p99 = scmp.ne.s32.totalorder %s88, %s91
      %p100 = scmp.eq.s32.totalorder %s25, 11
      %p101 = por %p99, %p100
      %p102 = scmp.ne.s32.totalorder %s91, %s92
      %p103 = scmp.eq.s32.totalorder %s25, 0
      %p104 = por %p102, %p103
      %p105 = scmp.ne.s32.totalorder %s91, %s92
      %p106 = scmp.eq.s32.totalorder %s26, 11
      %p107 = por %p105, %p106
      %p109 = scmp.ne.s32.totalorder %s92, %s108
      %p110 = scmp.eq.s32.totalorder %s26, 0
      %p111 = por %p109, %p110
      %s112 = ssub.s32 %s29, %s45
      %p113 = scmp.eq.s32.totalorder %s112, 0
      %s115 = sadd.s32 %s114, 1
      %s116 = scalar_select %p113, %s114, %s115
      %p119 = pneg %p113
      %p120 = scmp.eq.s32.totalorder %s20, 11
      %p121 = por %p119, %p120
      %p122 = scmp.ne.s32.totalorder %s114, %s117
      %p123 = scmp.eq.s32.totalorder %s20, 0
      %p124 = por %p122, %p123
      %p125 = scmp.ne.s32.totalorder %s114, %s117
      %p126 = scmp.eq.s32.totalorder %s25, 11
      %p127 = por %p125, %p126
      %p128 = scmp.ne.s32.totalorder %s117, %s118
      %p129 = scmp.eq.s32.totalorder %s25, 0
      %p130 = por %p128, %p129
      %p131 = scmp.ne.s32.totalorder %s117, %s118
      %p132 = scmp.eq.s32.totalorder %s26, 11
      %p133 = por %p131, %p132
      %p135 = scmp.ne.s32.totalorder %s118, %s134
      %p136 = scmp.eq.s32.totalorder %s26, 0
      %p137 = por %p135, %p136
      %s138 = sadd.s32 %s27, %s28
      %s139 = sadd.s32 %s53, %s49
      %s140 = ssub.s32 %s138, %s139
      %p141 = scmp.eq.s32.totalorder %s140, 0
      %s143 = sadd.s32 %s142, 1
      %s144 = scalar_select %p141, %s142, %s143
      %p147 = pneg %p141
      %p148 = scmp.eq.s32.totalorder %s20, 11
      %p149 = por %p147, %p148
      %p150 = scmp.ne.s32.totalorder %s142, %s145
      %p151 = scmp.eq.s32.totalorder %s20, 0
      %p152 = por %p150, %p151
      %p153 = scmp.ne.s32.totalorder %s142, %s145
      %p154 = scmp.eq.s32.totalorder %s25, 11
      %p155 = por %p153, %p154
      %p156 = scmp.ne.s32.totalorder %s145, %s146
      %p157 = scmp.eq.s32.totalorder %s25, 0
      %p158 = por %p156, %p157
      %p159 = scmp.ne.s32.totalorder %s145, %s146
      %p160 = scmp.eq.s32.totalorder %s26, 11
      %p161 = por %p159, %p160
      %p163 = scmp.ne.s32.totalorder %s146, %s162
      %p164 = scmp.eq.s32.totalorder %s26, 0
      %p165 = por %p163, %p164
      %s166 = ssub.s32 %s27, %s53
      %s167 = ssub.s32 %s29, %s45
      %s168 = sor.u32 %s166, %s167
      %p169 = scmp.eq.s32.totalorder %s168, 0
      %s171 = sadd.s32 %s170, 1
      %s172 = scalar_select %p169, %s170, %s171
      %p175 = pneg %p169
      %p176 = scmp.eq.s32.totalorder %s20, 11
      %p177 = por %p175, %p176
      %p178 = scmp.ne.s32.totalorder %s170, %s173
      %p179 = scmp.eq.s32.totalorder %s20, 0
      %p180 = por %p178, %p179
      %p181 = scmp.ne.s32.totalorder %s170, %s173
      %p182 = scmp.eq.s32.totalorder %s25, 11
      %p183 = por %p181, %p182
      %p184 = scmp.ne.s32.totalorder %s173, %s174
      %p185 = scmp.eq.s32.totalorder %s25, 0
      %p186 = por %p184, %p185
      %p187 = scmp.ne.s32.totalorder %s173, %s174
      %p188 = scmp.eq.s32.totalorder %s26, 11
      %p189 = por %p187, %p188
      %p191 = scmp.ne.s32.totalorder %s174, %s190
      %p192 = scmp.eq.s32.totalorder %s26, 0
      %p193 = por %p191, %p192
      %s194 = sadd.s32 %s27, %s28
      %s195 = sadd.s32 %s53, %s49
      %s196 = ssub.s32 %s194, %s195
      %s197 = ssub.s32 %s29, %s45
      %s198 = sor.u32 %s196, %s197
      %p199 = scmp.eq.s32.totalorder %s198, 0
      %s201 = sadd.s32 %s200, 1
      %s202 = scalar_select %p199, %s200, %s201
      %p205 = pneg %p199
      %p206 = scmp.eq.s32.totalorder %s20, 11
      %p207 = por %p205, %p206
      %p208 = scmp.ne.s32.totalorder %s200, %s203
      %p209 = scmp.eq.s32.totalorder %s20, 0
      %p210 = por %p208, %p209
      %p211 = scmp.ne.s32.totalorder %s200, %s203
      %p212 = scmp.eq.s32.totalorder %s25, 11
      %p213 = por %p211, %p212
      %p214 = scmp.ne.s32.totalorder %s203, %s204
      %p215 = scmp.eq.s32.totalorder %s25, 0
      %p216 = por %p214, %p215
      %p217 = scmp.ne.s32.totalorder %s203, %s204
      %p218 = scmp.eq.s32.totalorder %s26, 11
      %p219 = por %p217, %p218
      %p221 = scmp.ne.s32.totalorder %s204, %s220
      %p222 = scmp.eq.s32.totalorder %s26, 0
      %p223 = por %p221, %p222
      %p224 = scmp.le.s32.totalorder 1, %s20
      %p225 = scmp.lt.s32.totalorder %s20, 13
      %p226 = pnand %p224, %p225
      %p227 = pneg %p226
      // Predicated region
      $region9: #{tpu_custom_call.1} parent=5 // pred_check
        _
      $region10: #{tpu_custom_call.1} parent=5 // pred_check_branch
        %229 = sbr.rel (%p226) target = $region12
      $region11: #{tpu_custom_call.1} parent=5 // pred_region
        %s230 = ssub.s32 %s20, 1
      $region12: #{tpu_custom_call.1} parent=5 // pred_fallthru
        _
      %p231 = scmp.lt.s32.totalorder %s20, 12
      // Predicated region
      $region13: #{tpu_custom_call.1} parent=5 // pred_check
        %p232 = pneg %p231
      $region14: #{tpu_custom_call.1} parent=5 // pred_check_branch
        %234 = sbr.rel (%p232) target = $region16
      $region15: #{tpu_custom_call.1} parent=5 // pred_region
        // Predicated region
        $region17: #{tpu_custom_call.1} parent=15 // pred_check
          %p235 = pneg %p70
        $region18: #{tpu_custom_call.1} parent=15 // pred_check_branch
          %237 = sbr.rel (%p235) target = $region20
        $region19: #{tpu_custom_call.1} parent=15 // pred_region
          %s238 = sand.u32 %s60, 1
          %s239 = scalar_lea.sflag [#allocation4], %s238
          %s240 = sand.u32 %s60, 1
          %s241 = smul.addr %s240, 16
          %s242 = scalar_lea.vmem [#allocation3], %s241
          %s243 = sadd.s32 %s27, %s28
          %s244 = smul.u32 2, %s243
          %246 = vsyncadd %s239, 0
          %s247 = smul.addr %s244, 2
          %s248 = sadd.s32 %s30, %s247
          %s249 = smul.addr %s248, 8
          %s250 = scalar_lea.hbm %s0, %s249
          %s251 = sshll.u32 %s250, 4
          %s252 = int_to_ptr.hbm [resolvable:$true] %s251
          %s253 = sshll.u32 %s242, 4
          %s254 = int_to_ptr.vmem [resolvable:$true] %s253
          %259 = dma.hbm_to_vmem [thread:$0]  %s252, 256, %s254, %s239, 256, 128, 8
        $region20: #{tpu_custom_call.1} parent=15 // pred_fallthru
          _
        // Predicated region
        $region21: #{tpu_custom_call.1} parent=15 // pred_check
          %p260 = pneg %p98
        $region22: #{tpu_custom_call.1} parent=15 // pred_check_branch
          %262 = sbr.rel (%p260) target = $region24
        $region23: #{tpu_custom_call.1} parent=15 // pred_region
          %s263 = sand.u32 %s20, 1
          %s264 = scalar_lea.sflag [#allocation7], %s263
          %s265 = sand.u32 %s88, 1
          %s266 = smul.addr %s265, 256
          %s267 = scalar_lea.vmem [#allocation6], %s266
          %s268 = smul.u32 16, %s30
          %s269 = smul.u32 2, %s29
          %271 = vsyncadd %s264, 0
          %s272 = smul.addr %s268, 6
          %s273 = sadd.s32 %s269, %s272
          %s274 = smul.addr %s273, 8
          %s275 = scalar_lea.hbm %s1, %s274
          %s276 = sshll.u32 %s275, 4
          %s277 = int_to_ptr.hbm [resolvable:$true] %s276
          %s278 = sshll.u32 %s267, 4
          %s279 = int_to_ptr.vmem [resolvable:$true] %s278
          %284 = dma.hbm_to_vmem [thread:$0]  %s277, 4096, %s279, %s264, 768, 256, 16
        $region24: #{tpu_custom_call.1} parent=15 // pred_fallthru
          _
        // Predicated region
        $region25: #{tpu_custom_call.1} parent=15 // pred_check
          %p285 = pneg %p124
        $region26: #{tpu_custom_call.1} parent=15 // pred_check_branch
          %287 = sbr.rel (%p285) target = $region28
        $region27: #{tpu_custom_call.1} parent=15 // pred_region
          %s288 = smul.u32 2, %s29
          %p289 = scmp.lt.s32.totalorder %s288, 5
          %s290 = scalar_select %p289, %s288, 5
          %s291 = scalar_lea.vmem %s2, %s290
          %s292 = smul.u32 2, %s29
        $region28: #{tpu_custom_call.1} parent=15 // pred_fallthru
          _
        // Predicated region
        $region29: #{tpu_custom_call.1} parent=15 // pred_check
          %p293 = pneg %p152
        $region30: #{tpu_custom_call.1} parent=15 // pred_check_branch
          %295 = sbr.rel (%p293) target = $region32
        $region31: #{tpu_custom_call.1} parent=15 // pred_region
          %s296 = sadd.s32 %s27, %s28
          %s297 = smul.u32 2, %s296
          %p298 = scmp.lt.s32.totalorder %s297, 3
          %s299 = scalar_select %p298, %s297, 3
          %s300 = smul.addr %s299, 8
          %s301 = scalar_lea.vmem %s3, %s300
          %s302 = sadd.s32 %s27, %s28
          %s303 = smul.u32 2, %s302
        $region32: #{tpu_custom_call.1} parent=15 // pred_fallthru
          _
        // Predicated region
        $region33: #{tpu_custom_call.1} parent=15 // pred_check
          %p304 = pneg %p180
        $region34: #{tpu_custom_call.1} parent=15 // pred_check_branch
          %306 = sbr.rel (%p304) target = $region36
        $region35: #{tpu_custom_call.1} parent=15 // pred_region
          %s307 = sand.u32 %s20, 1
          %s308 = scalar_lea.sflag [#allocation7], %s307
          %s309 = sand.u32 %s170, 1
          %s310 = smul.addr %s309, 16
          %s311 = scalar_lea.vmem [#allocation8], %s310
          %s312 = smul.u32 2, %s29
          %314 = vsyncadd %s308, 0
          %s315 = smul.addr %s27, 6
          %s316 = sadd.s32 %s312, %s315
          %s317 = smul.addr %s316, 8
          %s318 = scalar_lea.hbm %s4, %s317
          %s320 = sshll.u32 %s318, 4
          %s321 = int_to_ptr.hbm [resolvable:$true] %s320
          %s322 = sshll.u32 %s311, 4
          %s323 = int_to_ptr.vmem [resolvable:$true] %s322
          %325 = dma.hbm_to_vmem [thread:$0]  %s321, 256, %s323, %s308
        $region36: #{tpu_custom_call.1} parent=15 // pred_fallthru
          _
      $region16: #{tpu_custom_call.1} parent=5 // pred_fallthru
        _
      %p326 = scmp.le.s32.totalorder 1, %s20
      %p327 = scmp.lt.s32.totalorder %s20, 13
      %p328 = pnand %p326, %p327
      %p329 = pneg %p328
      // Predicated region
      $region37: #{tpu_custom_call.1} parent=5 // pred_check
        _
      $region38: #{tpu_custom_call.1} parent=5 // pred_check_branch
        %331 = sbr.rel (%p328) target = $region40
      $region39: #{tpu_custom_call.1} parent=5 // pred_region
        %s332 = ssub.s32 %s20, 1
        %s333 = sand.u32 %s63, 1
        %s334 = scalar_lea.sflag [#allocation4], %s333
        %s335 = sand.u32 %s63, 1
        %s336 = smul.addr %s335, 16
        %s337 = scalar_lea.vmem [#allocation3], %s336
        // Predicated region
        $region41: #{tpu_custom_call.1} parent=39 // pred_check
          %p338 = pneg %p76
        $region42: #{tpu_custom_call.1} parent=39 // pred_check_branch
          %340 = sbr.rel (%p338) target = $region44
        $region43: #{tpu_custom_call.1} parent=39 // pred_region
          %342 = dma.done %s334, 256
        $region44: #{tpu_custom_call.1} parent=39 // pred_fallthru
          _
        %s343 = sand.u32 %s25, 1
        %s344 = scalar_lea.sflag [#allocation7], %s343
        %s345 = sand.u32 %s91, 1
        %s346 = smul.addr %s345, 256
        %s347 = scalar_lea.vmem [#allocation6], %s346
        // Predicated region
        $region45: #{tpu_custom_call.1} parent=39 // pred_check
          %p348 = pneg %p104
        $region46: #{tpu_custom_call.1} parent=39 // pred_check_branch
          %350 = sbr.rel (%p348) target = $region48
        $region47: #{tpu_custom_call.1} parent=39 // pred_region
          %352 = dma.done %s344, 4096
        $region48: #{tpu_custom_call.1} parent=39 // pred_fallthru
          _
        %s353 = sand.u32 %s25, 1
        %s354 = scalar_lea.sflag [#allocation7], %s353
        %s355 = sand.u32 %s173, 1
        %s356 = smul.addr %s355, 16
        %s357 = scalar_lea.vmem [#allocation8], %s356
        // Predicated region
        $region49: #{tpu_custom_call.1} parent=39 // pred_check
          %p358 = pneg %p186
        $region50: #{tpu_custom_call.1} parent=39 // pred_check_branch
          %360 = sbr.rel (%p358) target = $region52
        $region51: #{tpu_custom_call.1} parent=39 // pred_region
          %362 = dma.done %s354, 256
        $region52: #{tpu_custom_call.1} parent=39 // pred_fallthru
          _
        %s363 = sand.u32 %s63, 1
        %s364 = scalar_lea.sflag [#allocation4], %s363
        %s365 = sand.u32 %s63, 1
        %s366 = smul.addr %s365, 16
        %s367 = scalar_lea.vmem [#allocation3], %s366
        %p368 = pneg %p76
        %p369 = pneg %p73
        %s370 = sand.u32 %s25, 1
        %s371 = scalar_lea.sflag [#allocation7], %s370
        %s372 = sand.u32 %s91, 1
        %s373 = smul.addr %s372, 256
        %s374 = scalar_lea.vmem [#allocation6], %s373
        %p375 = pneg %p104
        %p376 = pneg %p101
        %s377 = smul.u32 2, %s33
        %p378 = scmp.lt.s32.totalorder %s377, 5
        %s379 = scalar_select %p378, %s377, 5
        %s380 = scalar_lea.vmem %s2, %s379
        %p381 = pneg %p130
        %p382 = pneg %p127
        %s383 = sadd.s32 %s31, %s32
        %s384 = smul.u32 2, %s383
        %p385 = scmp.lt.s32.totalorder %s384, 3
        %s386 = scalar_select %p385, %s384, 3
        %s387 = smul.addr %s386, 8
        %s388 = scalar_lea.vmem %s3, %s387
        %p389 = pneg %p158
        %p390 = pneg %p155
        %s391 = sand.u32 %s25, 1
        %s392 = scalar_lea.sflag [#allocation7], %s391
        %s393 = sand.u32 %s173, 1
        %s394 = smul.addr %s393, 16
        %s395 = scalar_lea.vmem [#allocation8], %s394
        %p396 = pneg %p186
        %p397 = pneg %p183
        %p398 = pneg %p216
        %p399 = pneg %p213
        %s400 = sand.u32 %s203, 1
        %s401 = scalar_lea.sflag [#allocation5], %s400
        %s402 = sand.u32 %s203, 1
        %s403 = smul.addr %s402, 32
        %s404 = scalar_lea.vmem [#allocation9], %s403
        %s405 = sadd.s32 %s31, %s32
        %s406 = smul.u32 2, %s405
        %s407 = smul.u32 16, %s34
        %s408 = smul.u32 2, %s33
        %s409 = smul.u32 2, %s33
        %p410 = scmp.lt.s32.totalorder %s409, 5
        %s411 = scalar_select %p410, %s409, 5
        %s412 = scalar_lea.vmem %s2, %s411
        %s413 = smul.u32 2, %s33
        %s414 = sadd.s32 %s31, %s32
        %s415 = smul.u32 2, %s414
        %p416 = scmp.lt.s32.totalorder %s415, 3
        %s417 = scalar_select %p416, %s415, 3
        %s418 = smul.addr %s417, 8
        %s419 = scalar_lea.vmem %s3, %s418
        %s420 = sadd.s32 %s31, %s32
        %s421 = smul.u32 2, %s420
        %s422 = smul.u32 2, %s33
        %s423 = sadd.s32 %s31, %s32
        %s424 = smul.u32 2, %s423
        %s425 = smul.u32 2, %s33
        %p426 = scmp.eq.s32.totalorder %s34, 0
        // Predicated region
        $region53: #{tpu_custom_call.1} parent=39 // pred_check
          %p427 = pneg %p426
        $region54: #{tpu_custom_call.1} parent=39 // pred_check_branch
          %429 = sbr.rel (%p427) target = $region56
        $region55: #{tpu_custom_call.1} parent=39 // pred_region
          %v430 = vld [vmem:[%s412] sm:$0x3]
          %v432 = vperm.slane %v430, 0
          %v433 = vperm.slane %v430, 1
          %436 = vst [vmem:[#allocation2] sm:$0xff] %v432
          %437 = vst [vmem:[#allocation2 + $0x8] sm:$0xff] %v433
          %438 = vst [vmem:[#allocation2 + $0x10] sm:$0xff] %v432
          %439 = vst [vmem:[#allocation2 + $0x18] sm:$0xff] %v433
        $region56: #{tpu_custom_call.1} parent=39 // pred_fallthru
          _
        %v440 = vld [vmem:[#allocation2] sm:$0xff]
        %v441 = vld [vmem:[#allocation2 + $0x8] sm:$0xff]
        %v442 = vld [vmem:[#allocation2 + $0x10] sm:$0xff]
        %v443 = vld [vmem:[#allocation2 + $0x18] sm:$0xff]
        %v444 = vld [vmem:[%s337] sm:$0xff]
        %v445 = vld [vmem:[%s337 + $0x8] sm:$0xff]
        %v446 = vld [vmem:[%s347] sm:$0xff]
        %v447 = vld [vmem:[%s347 + $0x8] sm:$0xff]
        %v448 = vld [vmem:[%s347 + $0x10] sm:$0xff]
        %v449 = vld [vmem:[%s347 + $0x18] sm:$0xff]
        %v450 = vld [vmem:[%s347 + $0x20] sm:$0xff]
        %v451 = vld [vmem:[%s347 + $0x28] sm:$0xff]
        %v452 = vld [vmem:[%s347 + $0x30] sm:$0xff]
        %v453 = vld [vmem:[%s347 + $0x38] sm:$0xff]
        %v454 = vld [vmem:[%s347 + $0x40] sm:$0xff]
        %v455 = vld [vmem:[%s347 + $0x48] sm:$0xff]
        %v456 = vld [vmem:[%s347 + $0x50] sm:$0xff]
        %v457 = vld [vmem:[%s347 + $0x58] sm:$0xff]
        %v458 = vld [vmem:[%s347 + $0x60] sm:$0xff]
        %v459 = vld [vmem:[%s347 + $0x68] sm:$0xff]
        %v460 = vld [vmem:[%s347 + $0x70] sm:$0xff]
        %v461 = vld [vmem:[%s347 + $0x78] sm:$0xff]
        %v462 = vld [vmem:[%s347 + $0x80] sm:$0xff]
        %v463 = vld [vmem:[%s347 + $0x88] sm:$0xff]
        %v464 = vld [vmem:[%s347 + $0x90] sm:$0xff]
        %v465 = vld [vmem:[%s347 + $0x98] sm:$0xff]
        %v466 = vld [vmem:[%s347 + $0xa0] sm:$0xff]
        %v467 = vld [vmem:[%s347 + $0xa8] sm:$0xff]
        %v468 = vld [vmem:[%s347 + $0xb0] sm:$0xff]
        %v469 = vld [vmem:[%s347 + $0xb8] sm:$0xff]
        %v470 = vld [vmem:[%s347 + $0xc0] sm:$0xff]
        %v471 = vld [vmem:[%s347 + $0xc8] sm:$0xff]
        %v472 = vld [vmem:[%s347 + $0xd0] sm:$0xff]
        %v473 = vld [vmem:[%s347 + $0xd8] sm:$0xff]
        %v474 = vld [vmem:[%s347 + $0xe0] sm:$0xff]
        %v475 = vld [vmem:[%s347 + $0xe8] sm:$0xff]
        %v476 = vld [vmem:[%s347 + $0xf0] sm:$0xff]
        %v477 = vld [vmem:[%s347 + $0xf8] sm:$0xff]
        %478 = vmatpush.msra.mxu0 %v476
        %479 = vmatpush.msra.mxu0 %v474
        %480 = vmatpush.msra.mxu0 %v472
        %481 = vmatpush.msra.mxu0 %v470
        %482 = vmatpush.msra.mxu0 %v468
        %483 = vmatpush.msra.mxu0 %v466
        %484 = vmatpush.msra.mxu0 %v464
        %485 = vmatpush.msra.mxu0 %v462
        %486 = vmatpush.msra.mxu0 %v460
        %487 = vmatpush.msra.mxu0 %v458
        %488 = vmatpush.msra.mxu0 %v456
        %489 = vmatpush.msra.mxu0 %v454
        %490 = vmatpush.msra.mxu0 %v452
        %491 = vmatpush.msra.mxu0 %v450
        %492 = vmatpush.msra.mxu0 %v448
        %493 = vmatpush.msra.mxu0 %v446
        %494 = vmatmul.f32.gmra.mxu0 %v444
        %v495 = vpop.f32.mrf.mxu0
        %v496 = vadd.f32 0.0, %v495
        %497 = vmatmul.f32.gmra.mxu0 %v445
        %v498 = vpop.f32.mrf.mxu0
        %v499 = vadd.f32 0.0, %v498
        %500 = vdwg.mxu0
        %501 = vmatpush.msra.mxu0 %v477
        %502 = vmatpush.msra.mxu0 %v475
        %503 = vmatpush.msra.mxu0 %v473
        %504 = vmatpush.msra.mxu0 %v471
        %505 = vmatpush.msra.mxu0 %v469
        %506 = vmatpush.msra.mxu0 %v467
        %507 = vmatpush.msra.mxu0 %v465
        %508 = vmatpush.msra.mxu0 %v463
        %509 = vmatpush.msra.mxu0 %v461
        %510 = vmatpush.msra.mxu0 %v459
        %511 = vmatpush.msra.mxu0 %v457
        %512 = vmatpush.msra.mxu0 %v455
        %513 = vmatpush.msra.mxu0 %v453
        %514 = vmatpush.msra.mxu0 %v451
        %515 = vmatpush.msra.mxu0 %v449
        %516 = vmatpush.msra.mxu0 %v447
        %517 = vmatmul.f32.gmra.mxu0 %v444
        %v518 = vpop.f32.mrf.mxu0
        %v519 = vadd.f32 0.0, %v518
        %520 = vmatmul.f32.gmra.mxu0 %v445
        %v521 = vpop.f32.mrf.mxu0
        %v522 = vadd.f32 0.0, %v521
        %523 = vdwg.mxu0
        %v524 = vadd.f32 %v440, %v496
        %v525 = vadd.f32 %v441, %v519
        %v526 = vadd.f32 %v442, %v499
        %v527 = vadd.f32 %v443, %v522
        %528 = vst [vmem:[#allocation2] sm:$0xff] %v524
        %529 = vst [vmem:[#allocation2 + $0x8] sm:$0xff] %v525
        %530 = vst [vmem:[#allocation2 + $0x10] sm:$0xff] %v526
        %531 = vst [vmem:[#allocation2 + $0x18] sm:$0xff] %v527
        %p532 = scmp.eq.s32.totalorder %s34, 1
        // Predicated region
        $region57: #{tpu_custom_call.1} parent=39 // pred_check
          %p533 = pneg %p532
        $region58: #{tpu_custom_call.1} parent=39 // pred_check_branch
          %535 = sbr.rel (%p533) target = $region60
        $region59: #{tpu_custom_call.1} parent=39 // pred_region
          %v536 = vld [vmem:[#allocation2] sm:$0xff]
          %v537 = vld [vmem:[#allocation2 + $0x8] sm:$0xff]
          %v538 = vld [vmem:[#allocation2 + $0x10] sm:$0xff]
          %v539 = vld [vmem:[#allocation2 + $0x18] sm:$0xff]
          %s540 = smul.u32 %s33, 256
          %p541 = scmp.ge.s32.totalorder %s540, 256
          %p542 = scmp.lt.s32.totalorder %s540, 512
          %p543 = pnand %p541, %p542
          %p544 = pneg %p543
          // Predicated region
          $region61: #{tpu_custom_call.1} parent=59 // pred_check
            _
          $region62: #{tpu_custom_call.1} parent=59 // pred_check_branch
            %546 = sbr.rel (%p543) target = $region64
          $region63: #{tpu_custom_call.1} parent=59 // pred_region
            %547 = vst [vmem:[%s404] sm:$0xff] %v536
            %548 = vst [vmem:[%s404 + $0x8] sm:$0xff] %v537
            %549 = vst [vmem:[%s404 + $0x10] sm:$0xff] %v538
            %550 = vst [vmem:[%s404 + $0x18] sm:$0xff] %v539
          $region64: #{tpu_custom_call.1} parent=59 // pred_fallthru
            _
          // Predicated region
          $region65: #{tpu_custom_call.1} parent=59 // pred_check
            %p551 = pneg %p543
          $region66: #{tpu_custom_call.1} parent=59 // pred_check_branch
            %553 = sbr.rel (%p551) target = $region68
          $region67: #{tpu_custom_call.1} parent=59 // pred_region
            %v554 = vld [vmem:[%s419] sm:$0xff]
            %v555 = vld [vmem:[%s419 + $0x8] sm:$0xff]
            %v556 = vld [vmem:[%s357] sm:$0xff]
            %v557 = vld [vmem:[%s357 + $0x8] sm:$0xff]
            %vm558 = vcmask 64512
            %v560 = vsel %vm558, %v554, 0
            %v563 = vsel %vm558, %v555, 0
            %565 = vmatpush.msra.mxu0 0.0
            %566 = vmatpush.msra.mxu0 0.0
            %567 = vmatpush.msra.mxu0 0.0
            %568 = vmatpush.msra.mxu0 0.0
            %569 = vmatpush.msra.mxu0 0.0
            %570 = vmatpush.msra.mxu0 0.0
            %571 = vmatpush.msra.mxu0 0.0
            %572 = vmatpush.msra.mxu0 0.0
            %573 = vmatpush.msra.mxu0 0.0
            %574 = vmatpush.msra.mxu0 0.0
            %575 = vmatpush.msra.mxu0 0.0
            %576 = vmatpush.msra.mxu0 0.0
            %577 = vmatpush.msra.mxu0 0.0
            %578 = vmatpush.msra.mxu0 0.0
            %579 = vmatpush.msra.mxu0 0.0
            %580 = vmatpush.msra.mxu0 %v556
            %581 = vmatmul.f32.gmra.mxu0 %v560
            %v582 = vpop.f32.mrf.mxu0
            %v583 = vadd.f32 0.0, %v582
            %584 = vmatmul.f32.gmra.mxu0 %v563
            %v585 = vpop.f32.mrf.mxu0
            %v586 = vadd.f32 0.0, %v585
            %587 = vdwg.mxu0
            %588 = vmatpush.msra.mxu0 0.0
            %589 = vmatpush.msra.mxu0 0.0
            %590 = vmatpush.msra.mxu0 0.0
            %591 = vmatpush.msra.mxu0 0.0
            %592 = vmatpush.msra.mxu0 0.0
            %593 = vmatpush.msra.mxu0 0.0
            %594 = vmatpush.msra.mxu0 0.0
            %595 = vmatpush.msra.mxu0 0.0
            %596 = vmatpush.msra.mxu0 0.0
            %597 = vmatpush.msra.mxu0 0.0
            %598 = vmatpush.msra.mxu0 0.0
            %599 = vmatpush.msra.mxu0 0.0
            %600 = vmatpush.msra.mxu0 0.0
            %601 = vmatpush.msra.mxu0 0.0
            %602 = vmatpush.msra.mxu0 0.0
            %603 = vmatpush.msra.mxu0 %v557
            %604 = vmatmul.f32.gmra.mxu0 %v560
            %v605 = vpop.f32.mrf.mxu0
            %v606 = vadd.f32 0.0, %v605
            %607 = vmatmul.f32.gmra.mxu0 %v563
            %v608 = vpop.f32.mrf.mxu0
            %v609 = vadd.f32 0.0, %v608
            %610 = vdwg.mxu0
            %v611 = vadd.f32 %v536, %v583
            %v612 = vadd.f32 %v537, %v606
            %v613 = vadd.f32 %v538, %v586
            %v614 = vadd.f32 %v539, %v609
            %615 = vst [vmem:[%s404] sm:$0xff] %v611
            %616 = vst [vmem:[%s404 + $0x8] sm:$0xff] %v612
            %617 = vst [vmem:[%s404 + $0x10] sm:$0xff] %v613
            %618 = vst [vmem:[%s404 + $0x18] sm:$0xff] %v614
          $region68: #{tpu_custom_call.1} parent=59 // pred_fallthru
            _
        $region60: #{tpu_custom_call.1} parent=39 // pred_fallthru
          _
        %s619 = sand.u32 %s203, 1
        %s620 = scalar_lea.sflag [#allocation5], %s619
        %s621 = sand.u32 %s203, 1
        %s622 = smul.addr %s621, 32
        %s623 = scalar_lea.vmem [#allocation9], %s622
        // Predicated region
        $region69: #{tpu_custom_call.1} parent=39 // pred_check
          %p624 = pneg %p213
        $region70: #{tpu_custom_call.1} parent=39 // pred_check_branch
          %626 = sbr.rel (%p624) target = $region72
        $region71: #{tpu_custom_call.1} parent=39 // pred_region
          %s627 = sadd.s32 %s31, %s32
          %s628 = smul.u32 2, %s627
          %s629 = smul.u32 2, %s33
          %631 = vsyncadd %s620, 0
          %s632 = smul.addr %s628, 6
          %s633 = sadd.s32 %s629, %s632
          %s634 = smul.addr %s633, 8
          %s635 = scalar_lea.hbm %s5, %s634
          %s636 = sshll.u32 %s623, 4
          %s637 = int_to_ptr.vmem [resolvable:$true] %s636
          %s638 = sshll.u32 %s635, 4
          %s639 = int_to_ptr.hbm [resolvable:$true] %s638
          %644 = dma.vmem_to_hbm [thread:$0]  %s637, 512, %s639, %s620, 256, 768, 16
        $region72: #{tpu_custom_call.1} parent=39 // pred_fallthru
          _
      $region40: #{tpu_custom_call.1} parent=5 // pred_fallthru
        _
      %p645 = scmp.le.s32.totalorder 2, %s20
      // Predicated region
      $region73: #{tpu_custom_call.1} parent=5 // pred_check
        %p646 = pneg %p645
      $region74: #{tpu_custom_call.1} parent=5 // pred_check_branch
        %648 = sbr.rel (%p646) target = $region76
      $region75: #{tpu_custom_call.1} parent=5 // pred_region
        %s649 = ssub.s32 %s20, 2
        // Predicated region
        $region77: #{tpu_custom_call.1} parent=75 // pred_check
          %p650 = pneg %p219
        $region78: #{tpu_custom_call.1} parent=75 // pred_check_branch
          %652 = sbr.rel (%p650) target = $region80
        $region79: #{tpu_custom_call.1} parent=75 // pred_region
          %s653 = sand.u32 %s204, 1
          %s654 = scalar_lea.sflag [#allocation5], %s653
          %s655 = sand.u32 %s204, 1
          %s656 = smul.addr %s655, 32
          %s657 = scalar_lea.vmem [#allocation9], %s656
          %659 = dma.done %s654, 512
        $region80: #{tpu_custom_call.1} parent=75 // pred_fallthru
          _
      $region76: #{tpu_custom_call.1} parent=5 // pred_fallthru
        _
    $region6: #{tpu_custom_call.1} parent=1 // loop_footer
      %s24 = sadd.s32 1, %s20
    $region7: #{tpu_custom_call.1} parent=1 // loop_footer_branch
      %19 = sbr.rel target = $region3
    $region8: #{tpu_custom_call.1} parent=1 // loop_exit
      _
    %660 = vsyncpa [#allocation4], 1
    %s661 = scalar_lea.sflag [#allocation4], 1
    %662 = vsyncpa %s661, 1
    %663 = vsyncpa [#allocation7], 1
    %s664 = scalar_lea.sflag [#allocation7], 1
    %665 = vsyncpa %s664, 1
    %666 = vsyncpa [#allocation5], 1
    %s667 = scalar_lea.sflag [#allocation5], 1
    %668 = vsyncpa %s667, 1

</llo_original>
